<compile_context>
chip_gen: v7x
topology: tpu7x:2x2x1
jax: 0.10.0
libtpu: 0.0.40
codegen_flags: <defaults>
</compile_context>

<pallas_src>
import functools

import jax
import jax.numpy as jnp
from jax import lax
from jax.experimental import pallas as pl
from jax.experimental.pallas import tpu as pltpu

NINF = -1e5  # finite "-inf" constant, as defined in partial_tagger.crf


def crf_kernel(logits_ref, trans_ref, flags_ref, out_ref, *, N):
    # blocks: logits (R, N) f32, trans (1, N*N) f32 (row-major i*N+j, resident),
    #         flags (R, 1) int32, out (R, N*N) f32
    NN = N * N

    logits = logits_ref[...]        # [R, N]
    trans = trans_ref[...]          # [1, NN]
    flags = flags_ref[...]          # [R, 1]: 0=masked-out, 1=valid t==0, 2=valid t>=1

    # Identity mask over the flattened tag-pair axis: k = i*N + j is diagonal
    # iff k % (N+1) == 0 (single mod, only on a [1, NN] iota, once per step).
    k = lax.broadcasted_iota(jnp.int32, (1, NN), 1)
    eye_flat = (k % (N + 1)) == 0

    # logits replicated along lanes: value at k is logits[row, k % N] == logits[row, j].
    # NOTE: this lane replication + the selects below fit within the HBM write
    # budget per output vreg; an MXU offload (one-hot matmul) would need
    # multi-pass f32 precision, so it is intentionally not used here.
    tiled = jnp.tile(logits, (1, N))                     # [R, NN]

    valid = flags > 0                                    # [R, 1]
    take_rest = flags > 1                                # [R, 1]

    # Special rows (t==0 or masked-out): diagonal is logits (t==0) or 0 (masked),
    # off-diagonal is NINF.  On the diagonal i == j, so `tiled` is logits[row, i].
    diag = jnp.where(valid, tiled, 0.0)                  # [R, NN]
    special = jnp.where(eye_flat, diag, NINF)            # [R, NN]

    out = jnp.where(take_rest, tiled + trans, special)
    out_ref[...] = out.astype(out_ref.dtype)


def _round_up(x, m):
    return (x + m - 1) // m * m


def _vmem_capacity_bytes():
    try:
        cap = getattr(pltpu.get_tpu_info(), "vmem_capacity_bytes", None)
        if cap:
            return int(cap)
    except Exception:
        pass
    return 64 * 1024 * 1024  # conservative fallback: v7x per-TensorCore VMEM


def crf_forward(logits, transitions, mask=None):
    """JAX/Pallas equivalent of CRF.forward.

    logits:      [B, T, N] float32
    transitions: [N, N]    float32
    mask:        [B, T]    bool (optional)
    returns:     [B, T, N, N] float32 log potentials
    """
    B, T, N = logits.shape
    BT, NN = B * T, N * N
    if mask is None:
        mask = jnp.ones((B, T), dtype=bool)

    # Tiny per-row flag (0 / 1 / 2) so the kernel needs no row-index arithmetic.
    is_t0 = (jnp.arange(T) == 0)[None, :]
    flags = jnp.where(mask, jnp.where(is_t0, 1, 2), 0).astype(jnp.int32).reshape(BT, 1)

    logits_flat = logits.reshape(BT, N)                  # metadata-only reshape
    trans_flat = transitions.reshape(1, NN).astype(logits.dtype)

    # ---- Row-tile sizing (lane-padded VMEM accounting: every block pads its
    # last dim to a multiple of 128 lanes in VMEM) ----
    out_row = _round_up(NN, 128) * 4                            # output bytes/row
    in_row = (_round_up(N, 128) + _round_up(1, 128)) * 4        # logits + flags bytes/row
    per_row_db = 2 * (out_row + in_row)                         # double-buffered

    vmem_cap = _vmem_capacity_bytes()
    ws_budget = min(vmem_cap // 2 - (8 << 20), 32 << 20)        # ~24 MiB on v7x, 32 MiB on v5e/v6e

    r_pipe = max(8, ((4 << 20) // out_row) // 8 * 8)            # ~4 MiB output per grid step
    r_grid = max(8, _round_up(-(-BT // 8), 8))                  # keep >= ~8 steps (v7x megacore)
    r_vmem = max(8, (ws_budget // per_row_db) // 8 * 8)         # fit the VMEM budget
    R = min(r_pipe, r_grid, r_vmem)

    grid = (pl.cdiv(BT, R),)                                    # ragged last block handled by Pallas
    ws_bytes = R * per_row_db + 2 * 8 * _round_up(NN, 128) * 4  # + resident transitions block
    vmem_limit = int(min(vmem_cap - (8 << 20), max(ws_bytes + (16 << 20), 24 << 20)))

    out_flat = pl.pallas_call(
        functools.partial(crf_kernel, N=N),
        out_shape=jax.ShapeDtypeStruct((BT, NN), logits.dtype),
        grid=grid,
        in_specs=[
            pl.BlockSpec((R, N), lambda g: (g, 0)),
            pl.BlockSpec((1, NN), lambda g: (0, 0)),            # resident (constant index_map)
            pl.BlockSpec((R, 1), lambda g: (g, 0)),
        ],
        out_specs=pl.BlockSpec((R, NN), lambda g: (g, 0)),
        compiler_params=pltpu.CompilerParams(
            dimension_semantics=("parallel",),
            vmem_limit_bytes=vmem_limit),
    )(logits_flat, trans_flat, flags)

    return out_flat.reshape(B, T, N, N)                         # metadata-only reshape


def crf_reference(logits, transitions, mask):
    """Pure-JAX port of the PyTorch forward, for verification."""
    B, T, N = logits.shape
    eye = jnp.eye(N, dtype=bool)
    init = logits[:, 0:1, :, None] * eye + NINF * (~eye)            # [B,1,N,N]
    rest = logits[:, 1:, None, :] + transitions[None, None]         # [B,T-1,N,N]
    lp = jnp.concatenate([init, rest], axis=1)                      # [B,T,N,N]
    mask_value = NINF * (~eye)
    mf = mask[..., None, None].astype(logits.dtype)
    return lp * mf + mask_value * (1.0 - mf)


def _run_case(key, B, T, N, lengths):
    k_logits, k_trans = jax.random.split(key)
    logits = jax.random.normal(k_logits, (B, T, N), dtype=jnp.float32)
    xavier_std = (2.0 / (N + N)) ** 0.5                  # nn.init.xavier_normal_ std
    transitions = xavier_std * jax.random.normal(k_trans, (N, N), dtype=jnp.float32)
    mask = jnp.arange(T)[None, :] < jnp.asarray(lengths, dtype=jnp.int32)[:, None]

    out = jax.block_until_ready(crf_forward(logits, transitions, mask))
    ref = crf_reference(logits, transitions, mask)
    assert out.shape == (B, T, N, N)
    assert jnp.allclose(out, ref, atol=1e-5, rtol=1e-5), f"mismatch (B={B},T={T},N={N})"

    # default (mask=None) path
    out_nm = jax.block_until_ready(crf_forward(logits, transitions))
    ref_nm = crf_reference(logits, transitions, jnp.ones((B, T), dtype=bool))
    assert jnp.allclose(out_nm, ref_nm, atol=1e-5, rtol=1e-5), "mismatch (mask=None)"


if __name__ == "__main__":
    key = jax.random.PRNGKey(0)
    k1, k2 = jax.random.split(key)
    # Case 1: BT divisible by the row tile.
    _run_case(k1, B=2, T=8, N=16, lengths=[8, 5])
    # Case 2: BT (=15) NOT divisible by the row tile (ragged last block) and
    # NN (=144) not a multiple of 128 lanes.
    _run_case(k2, B=3, T=5, N=12, lengths=[5, 3, 1])
    print("KERNEL_OK")
</pallas_src>

<mosaic_0001>
module attributes {stable_mosaic.version = 11 : i64} {
  func.func @crf_kernel(%arg0: i32, %arg1: memref<8x16xf32, #tpu.memory_space<vmem>>, %arg2: memref<1x256xf32, #tpu.memory_space<vmem>>, %arg3: memref<8x1xi32, #tpu.memory_space<vmem>>, %arg4: memref<8x256xf32, #tpu.memory_space<vmem>>) attributes {dimension_semantics = [#tpu.dimension_semantics<parallel>], iteration_bounds = array<i64: 2>, scalar_prefetch = 0 : i64, scratch_operands = 0 : i64, tpu.core_type = #tpu.core_type<tc>, window_params = [{transform_indices = @transform_0, window_bounds = array<i64: 8, 16>}, {pipeline_mode = #tpu.pipeline_mode<synchronous>, transform_indices = @transform_1, window_bounds = array<i64: 1, 256>}, {transform_indices = @transform_2, window_bounds = array<i64: 8, 1>}, {transform_indices = @transform_3, window_bounds = array<i64: 8, 256>}]} {
    %c0 = arith.constant 0 : index
    %c0_0 = arith.constant 0 : index
    %0 = vector.load %arg1[%c0, %c0_0] : memref<8x16xf32, #tpu.memory_space<vmem>>, vector<8x16xf32>
    %c0_1 = arith.constant 0 : index
    %c0_2 = arith.constant 0 : index
    %1 = vector.load %arg2[%c0_1, %c0_2] : memref<1x256xf32, #tpu.memory_space<vmem>>, vector<1x256xf32>
    %c0_3 = arith.constant 0 : index
    %c0_4 = arith.constant 0 : index
    %2 = vector.load %arg3[%c0_3, %c0_4] : memref<8x1xi32, #tpu.memory_space<vmem>>, vector<8x1xi32>
    %3 = tpu.iota {dimensions = array<i32: 1>} : vector<1x256xi32>
    %c17_i32 = arith.constant 17 : i32
    %c0_i32 = arith.constant 0 : i32
    %4 = arith.cmpi eq, %c17_i32, %c0_i32 : i32
    %c1_i32 = arith.constant 1 : i32
    %5 = arith.select %4, %c1_i32, %c17_i32 : i32
    %6 = vector.broadcast %5 : i32 to vector<1x256xi32>
    %7 = arith.remsi %3, %6 : vector<1x256xi32>
    %c0_i32_5 = arith.constant 0 : i32
    %8 = vector.broadcast %c0_i32_5 : i32 to vector<1x256xi32>
    %9 = arith.cmpi ne, %7, %8 : vector<1x256xi32>
    %c0_i32_6 = arith.constant 0 : i32
    %10 = vector.broadcast %c0_i32_6 : i32 to vector<1x256xi32>
    %11 = arith.cmpi slt, %7, %10 : vector<1x256xi32>
    %c0_i32_7 = arith.constant 0 : i32
    %12 = arith.cmpi slt, %5, %c0_i32_7 : i32
    %13 = vector.broadcast %12 : i1 to vector<1x256xi1>
    %14 = vector.broadcast %13 : vector<1x256xi1> to vector<1x256xi1>
    %15 = arith.xori %11, %14 : vector<1x256xi1>
    %16 = arith.andi %15, %9 : vector<1x256xi1>
    %17 = vector.broadcast %5 : i32 to vector<1x256xi32>
    %18 = arith.addi %7, %17 : vector<1x256xi32>
    %19 = arith.select %16, %18, %7 : vector<1x256xi1>, vector<1x256xi32>
    %c0_i32_8 = arith.constant 0 : i32
    %20 = vector.broadcast %c0_i32_8 : i32 to vector<1x256xi32>
    %21 = arith.cmpi eq, %19, %20 : vector<1x256xi32>
    %22 = tpu.concatenate %0, %0, %0, %0, %0, %0, %0, %0, %0, %0, %0, %0, %0, %0, %0, %0 in 1 : vector<8x16xf32>, vector<8x16xf32>, vector<8x16xf32>, vector<8x16xf32>, vector<8x16xf32>, vector<8x16xf32>, vector<8x16xf32>, vector<8x16xf32>, vector<8x16xf32>, vector<8x16xf32>, vector<8x16xf32>, vector<8x16xf32>, vector<8x16xf32>, vector<8x16xf32>, vector<8x16xf32>, vector<8x16xf32> -> vector<8x256xf32>
    %c0_i32_9 = arith.constant 0 : i32
    %23 = vector.broadcast %c0_i32_9 : i32 to vector<8x1xi32>
    %24 = arith.cmpi sgt, %2, %23 : vector<8x1xi32>
    %c1_i32_10 = arith.constant 1 : i32
    %25 = vector.broadcast %c1_i32_10 : i32 to vector<8x1xi32>
    %26 = arith.cmpi sgt, %2, %25 : vector<8x1xi32>
    %cst = arith.constant 0.000000e+00 : f32
    %27 = vector.shape_cast %24 : vector<8x1xi1> to vector<8x1xi1>
    %28 = vector.broadcast %27 : vector<8x1xi1> to vector<8x256xi1>
    %29 = vector.broadcast %cst : f32 to vector<8x256xf32>
    %30 = arith.select %28, %22, %29 : vector<8x256xi1>, vector<8x256xf32>
    %cst_11 = arith.constant -1.000000e+05 : f32
    %31 = vector.shape_cast %21 : vector<1x256xi1> to vector<1x256xi1>
    %32 = vector.broadcast %31 : vector<1x256xi1> to vector<8x256xi1>
    %33 = vector.broadcast %cst_11 : f32 to vector<8x256xf32>
    %34 = arith.select %32, %30, %33 : vector<8x256xi1>, vector<8x256xf32>
    %35 = vector.broadcast %1 : vector<1x256xf32> to vector<8x256xf32>
    %36 = arith.addf %22, %35 : vector<8x256xf32>
    %37 = vector.shape_cast %26 : vector<8x1xi1> to vector<8x1xi1>
    %38 = vector.broadcast %37 : vector<8x1xi1> to vector<8x256xi1>
    %39 = arith.select %38, %36, %34 : vector<8x256xi1>, vector<8x256xf32>
    %c0_12 = arith.constant 0 : index
    %c0_13 = arith.constant 0 : index
    %40 = vector.load %arg4[%c0_12, %c0_13] : memref<8x256xf32, #tpu.memory_space<vmem>>, vector<8x256xf32>
    tpu.vector_store %arg4[%c0_12, %c0_13], %39 {strides = array<i32>} : memref<8x256xf32, #tpu.memory_space<vmem>>, vector<8x256xf32>,
    return
  }
  func.func @transform_0(%arg0: i32) -> (i32, i32) {
    %c0_i32 = arith.constant 0 : i32
    %c0_i32_0 = arith.constant 0 : i32
    return %arg0, %c0_i32 : i32, i32
  }
  func.func @transform_1(%arg0: i32) -> (i32, i32) {
    %c0_i32 = arith.constant 0 : i32
    %c0_i32_0 = arith.constant 0 : i32
    %c0_i32_1 = arith.constant 0 : i32
    return %c0_i32, %c0_i32_0 : i32, i32
  }
  func.func @transform_2(%arg0: i32) -> (i32, i32) {
    %c0_i32 = arith.constant 0 : i32
    %c0_i32_0 = arith.constant 0 : i32
    return %arg0, %c0_i32 : i32, i32
  }
  func.func @transform_3(%arg0: i32) -> (i32, i32) {
    %c0_i32 = arith.constant 0 : i32
    %c0_i32_0 = arith.constant 0 : i32
    return %arg0, %c0_i32 : i32, i32
  }
}

</mosaic_0001>

<llo_original>
// kernel: tpu_custom_call.1
$region0: #{tpu_custom_call.1}
  #allocation0 [shape = 'u32[]', space=smem, size = 0x4, offset = 0x4, fixed_abs, tag = 'smem constant byte address 0x4 - core index']
  #allocation1 [shape = 'u32[144,128]{1,0:T(1,128)}', space=vmem, size = 0x12000, scoped, tag = 'internal scratch']
  %s0 = inlined_call_operand.vmem [shape: f32[16,16], index: 0, kind: input, shape index: {}]
  %s1 = inlined_call_operand.vmem [shape: f32[1,256], index: 1, kind: input, shape index: {}]
  %s2 = inlined_call_operand.vmem [shape: s32[16,1], index: 2, kind: input, shape index: {}]
  %s3 = inlined_call_operand.hbm [shape: f32[16,256], index: 3, kind: output, shape index: {}]
  %s4 = sld [smem:[#allocation0]]
  $region45: #{tpu_custom_call.1} parent=0
    _
  %s6 = ssub.s32 1, %s4
  %s7 = scalar_select 0, %s6, %s4
  $region1: #{tpu_custom_call.1} parent=0
    #allocation2 [shape = 'u8[16384]{0}', space=vmem, size = 0x4000, scoped, tag = 'output window, operand 0']
    #allocation3 [shape = 's32[2]{0}', space=sflag, size = 0x8, scoped, tag = 'scoped memory for tpu_custom_call.1']
    %8 = vsyncpa [#allocation3], 0
    %s9 = scalar_lea.sflag [#allocation3], 1
    %10 = vsyncpa %s9, 0
    loop: start=0, step=1, limit=4
    $region2: #{tpu_custom_call.1} parent=1 // loop_pre_header
      _
    $region3: #{tpu_custom_call.1} parent=1 // loop_header
      %s12 = sphi 0, %s16
      %p13 = scmp.ge.s32.totalorder %s12, 4
      %s22 = sphi 0, %s24
      %s25 = sphi 0, %s22
      %s26 = sphi 0, %s25
      %s42 = sphi 0, %s26
      %s46 = sphi 0, %s46
      %s48 = sphi 0, %s46
      %s49 = sphi 0, %s48
      %s63 = sphi 0, %s49
      %s69 = sphi 0, %s71
      %s72 = sphi 0, %s69
      %s73 = sphi 0, %s72
      %s89 = sphi 0, %s73
      %s95 = sphi 0, %s97
      %s98 = sphi 0, %s95
      %s99 = sphi 0, %s98
      %s115 = sphi 0, %s99
    $region4: #{tpu_custom_call.1} parent=1 // loop_header_branch
      %15 = sbr.rel (%p13) target = $region8
    $region5: #{tpu_custom_call.1} parent=1 // loop_body
      %s17 = ssub.s32 %s12, 1
      %s18 = ssub.s32 %s12, 2
      %s19 = sadd.s32 %s12, 1
      %s20 = ssub.s32 %s12, %s19
      %p21 = scmp.eq.s32.totalorder %s20, 0
      %s23 = sadd.s32 %s22, 1
      %s24 = scalar_select %p21, %s22, %s23
      %p27 = pneg %p21
      %p28 = scmp.eq.s32.totalorder %s12, 1
      %p29 = por %p27, %p28
      %p30 = scmp.ne.s32.totalorder %s22, %s25
      %p31 = scmp.eq.s32.totalorder %s12, 0
      %p32 = por %p30, %p31
      %p33 = scmp.ne.s32.totalorder %s22, %s25
      %p34 = scmp.eq.s32.totalorder %s17, 1
      %p35 = por %p33, %p34
      %p36 = scmp.ne.s32.totalorder %s25, %s26
      %p37 = scmp.eq.s32.totalorder %s17, 0
      %p38 = por %p36, %p37
      %p39 = scmp.ne.s32.totalorder %s25, %s26
      %p40 = scmp.eq.s32.totalorder %s18, 1
      %p41 = por %p39, %p40
      %p43 = scmp.ne.s32.totalorder %s26, %s42
      %p44 = scmp.eq.s32.totalorder %s18, 0
      %p45 = por %p43, %p44
      %s47 = sadd.s32 %s46, 1
      %p50 = scmp.eq.s32.totalorder %s12, 1
      %p51 = scmp.ne.s32.totalorder %s46, %s48
      %p52 = scmp.eq.s32.totalorder %s12, 0
      %p53 = por %p51, %p52
      %p54 = scmp.ne.s32.totalorder %s46, %s48
      %p55 = scmp.eq.s32.totalorder %s17, 1
      %p56 = por %p54, %p55
      %p57 = scmp.ne.s32.totalorder %s48, %s49
      %p58 = scmp.eq.s32.totalorder %s17, 0
      %p59 = por %p57, %p58
      %p60 = scmp.ne.s32.totalorder %s48, %s49
      %p61 = scmp.eq.s32.totalorder %s18, 1
      %p62 = por %p60, %p61
      %p64 = scmp.ne.s32.totalorder %s49, %s63
      %p65 = scmp.eq.s32.totalorder %s18, 0
      %p66 = por %p64, %p65
      %s67 = ssub.s32 %s12, %s19
      %p68 = scmp.eq.s32.totalorder %s67, 0
      %s70 = sadd.s32 %s69, 1
      %s71 = scalar_select %p68, %s69, %s70
      %p74 = pneg %p68
      %p75 = scmp.eq.s32.totalorder %s12, 1
      %p76 = por %p74, %p75
      %p77 = scmp.ne.s32.totalorder %s69, %s72
      %p78 = scmp.eq.s32.totalorder %s12, 0
      %p79 = por %p77, %p78
      %p80 = scmp.ne.s32.totalorder %s69, %s72
      %p81 = scmp.eq.s32.totalorder %s17, 1
      %p82 = por %p80, %p81
      %p83 = scmp.ne.s32.totalorder %s72, %s73
      %p84 = scmp.eq.s32.totalorder %s17, 0
      %p85 = por %p83, %p84
      %p86 = scmp.ne.s32.totalorder %s72, %s73
      %p87 = scmp.eq.s32.totalorder %s18, 1
      %p88 = por %p86, %p87
      %p90 = scmp.ne.s32.totalorder %s73, %s89
      %p91 = scmp.eq.s32.totalorder %s18, 0
      %p92 = por %p90, %p91
      %s93 = ssub.s32 %s12, %s19
      %p94 = scmp.eq.s32.totalorder %s93, 0
      %s96 = sadd.s32 %s95, 1
      %s97 = scalar_select %p94, %s95, %s96
      %p100 = pneg %p94
      %p101 = scmp.eq.s32.totalorder %s12, 1
      %p102 = por %p100, %p101
      %p103 = scmp.ne.s32.totalorder %s95, %s98
      %p104 = scmp.eq.s32.totalorder %s12, 0
      %p105 = por %p103, %p104
      %p106 = scmp.ne.s32.totalorder %s95, %s98
      %p107 = scmp.eq.s32.totalorder %s17, 1
      %p108 = por %p106, %p107
      %p109 = scmp.ne.s32.totalorder %s98, %s99
      %p110 = scmp.eq.s32.totalorder %s17, 0
      %p111 = por %p109, %p110
      %p112 = scmp.ne.s32.totalorder %s98, %s99
      %p113 = scmp.eq.s32.totalorder %s18, 1
      %p114 = por %p112, %p113
      %p116 = scmp.ne.s32.totalorder %s99, %s115
      %p117 = scmp.eq.s32.totalorder %s18, 0
      %p118 = por %p116, %p117
      %p119 = scmp.le.s32.totalorder 1, %s12
      %p120 = scmp.lt.s32.totalorder %s12, 3
      %p121 = pnand %p119, %p120
      %p122 = pneg %p121
      // Predicated region
      $region9: #{tpu_custom_call.1} parent=5 // pred_check
        _
      $region10: #{tpu_custom_call.1} parent=5 // pred_check_branch
        %124 = sbr.rel (%p121) target = $region12
      $region11: #{tpu_custom_call.1} parent=5 // pred_region
        %s125 = ssub.s32 %s12, 1
        // Predicated region
        $region13: #{tpu_custom_call.1} parent=11 // pred_check
          %p126 = pneg %p59
        $region14: #{tpu_custom_call.1} parent=11 // pred_check_branch
          %128 = sbr.rel (%p126) target = $region16
        $region15: #{tpu_custom_call.1} parent=11 // pred_region
          _
        $region16: #{tpu_custom_call.1} parent=11 // pred_fallthru
          _
      $region12: #{tpu_custom_call.1} parent=5 // pred_fallthru
        _
      %p129 = scmp.lt.s32.totalorder %s12, 2
      // Predicated region
      $region17: #{tpu_custom_call.1} parent=5 // pred_check
        %p130 = pneg %p129
      $region18: #{tpu_custom_call.1} parent=5 // pred_check_branch
        %132 = sbr.rel (%p130) target = $region20
      $region19: #{tpu_custom_call.1} parent=5 // pred_region
        // Predicated region
        $region21: #{tpu_custom_call.1} parent=19 // pred_check
          %p133 = pneg %p32
        $region22: #{tpu_custom_call.1} parent=19 // pred_check_branch
          %135 = sbr.rel (%p133) target = $region24
        $region23: #{tpu_custom_call.1} parent=19 // pred_region
          %p136 = scmp.lt.s32.totalorder %s12, 1
          %s137 = scalar_select %p136, %s12, 1
          %s138 = smul.addr %s137, 8
          %s139 = scalar_lea.vmem %s0, %s138
        $region24: #{tpu_custom_call.1} parent=19 // pred_fallthru
          _
        // Predicated region
        $region25: #{tpu_custom_call.1} parent=19 // pred_check
          %p140 = pneg %p79
        $region26: #{tpu_custom_call.1} parent=19 // pred_check_branch
          %142 = sbr.rel (%p140) target = $region28
        $region27: #{tpu_custom_call.1} parent=19 // pred_region
          %p143 = scmp.lt.s32.totalorder %s12, 1
          %s144 = scalar_select %p143, %s12, 1
          %s145 = smul.addr %s144, 8
          %s146 = scalar_lea.vmem %s2, %s145
        $region28: #{tpu_custom_call.1} parent=19 // pred_fallthru
          _
      $region20: #{tpu_custom_call.1} parent=5 // pred_fallthru
        _
      %p147 = scmp.le.s32.totalorder 1, %s12
      %p148 = scmp.lt.s32.totalorder %s12, 3
      %p149 = pnand %p147, %p148
      %p150 = pneg %p149
      // Predicated region
      $region29: #{tpu_custom_call.1} parent=5 // pred_check
        _
      $region30: #{tpu_custom_call.1} parent=5 // pred_check_branch
        %152 = sbr.rel (%p149) target = $region32
      $region31: #{tpu_custom_call.1} parent=5 // pred_region
        %s153 = ssub.s32 %s12, 1
        %p154 = scmp.lt.s32.totalorder %s17, 1
        %s155 = scalar_select %p154, %s17, 1
        %s156 = smul.addr %s155, 8
        %s157 = scalar_lea.vmem %s0, %s156
        %p158 = pneg %p38
        %p159 = pneg %p35
        %p160 = pneg %p59
        %p161 = pneg %p56
        %p162 = scmp.lt.s32.totalorder %s17, 1
        %s163 = scalar_select %p162, %s17, 1
        %s164 = smul.addr %s163, 8
        %s165 = scalar_lea.vmem %s2, %s164
        %p166 = pneg %p85
        %p167 = pneg %p82
        %p168 = pneg %p111
        %p169 = pneg %p108
        %s170 = sand.u32 %s98, 1
        %s171 = scalar_lea.sflag [#allocation3], %s170
        %s172 = sand.u32 %s98, 1
        %s173 = smul.addr %s172, 16
        %s174 = scalar_lea.vmem [#allocation2], %s173
        %p175 = scmp.lt.s32.totalorder %s17, 1
        %s176 = scalar_select %p175, %s17, 1
        %s177 = smul.addr %s176, 8
        %s178 = scalar_lea.vmem %s0, %s177
        %p179 = scmp.lt.s32.totalorder %s17, 1
        %s180 = scalar_select %p179, %s17, 1
        %s181 = smul.addr %s180, 8
        %s182 = scalar_lea.vmem %s2, %s181
        %v183 = vld [vmem:[%s178] sm:$0xff]
        %v184 = vld [vmem:[%s1] sm:$0x3]
        %v185 = vld [vmem:[%s182] sm:$0xff]
        %v186 = vlaneseq
        %v187 = vand.u32 %v186, 127
        %v188 = vadd.s32 %v187, 128
        %vm189 = vcmp.lt.s32.totalorder %v187, 0
        %v190 = vsub.s32 0, %v187
        %v191 = vsel %vm189, %v190, %v187
        %v192 = vmul.u32.u64.compose %v191, 4042322161
        %v193 = vextract.low.u32 %v192
        %v194 = vextract.high.u32 %v192
        %v195 = vshrl.u32 %v194, 4
        %v196 = vmul.u32 %v195, 17
        %v197 = vsub.s32 %v191, %v196
        %v198 = vsub.s32 0, %v197
        %v199 = vsel %vm189, %v198, %v197
        %vm200 = vcmp.lt.s32.totalorder %v188, 0
        %v201 = vsub.s32 0, %v188
        %v202 = vsel %vm200, %v201, %v188
        %v203 = vmul.u32.u64.compose %v202, 4042322161
        %v204 = vextract.low.u32 %v203
        %v205 = vextract.high.u32 %v203
        %v206 = vshrl.u32 %v205, 4
        %v207 = vmul.u32 %v206, 17
        %v208 = vsub.s32 %v202, %v207
        %v209 = vsub.s32 0, %v208
        %v210 = vsel %vm200, %v209, %v208
        %vm211 = vcmp.ne.s32.totalorder %v199, 0
        %vm212 = vcmp.ne.s32.totalorder %v210, 0
        %vm213 = vcmp.lt.s32.totalorder %v199, 0
        %vm214 = vcmp.lt.s32.totalorder %v210, 0
        %vm215 = vmand %vm213, %vm211
        %vm216 = vmand %vm214, %vm212
        %v217 = vadd.s32 %v199, 17
        %v218 = vadd.s32 %v210, 17
        %v219 = vsel %vm215, %v217, %v199
        %v220 = vsel %vm216, %v218, %v210
        %vm221 = vcmp.eq.s32.totalorder %v219, 0
        %vm222 = vcmp.eq.s32.totalorder %v220, 0
        %224 = vrot.lane.b32.xlu0 %v183, 16
        %v225 = vpop.permute.xlu0 %224
        %227 = vrot.lane.b32.xlu0 %v183, 32
        %v228 = vpop.permute.xlu0 %227
        %230 = vrot.lane.b32.xlu0 %v183, 48
        %v231 = vpop.permute.xlu0 %230
        %233 = vrot.lane.b32.xlu0 %v183, 64
        %v234 = vpop.permute.xlu0 %233
        %236 = vrot.lane.b32.xlu0 %v183, 80
        %v237 = vpop.permute.xlu0 %236
        %239 = vrot.lane.b32.xlu0 %v183, 96
        %v240 = vpop.permute.xlu0 %239
        %242 = vrot.lane.b32.xlu0 %v183, 112
        %v243 = vpop.permute.xlu0 %242
        %vm245 = vcmask 130048
        %v246 = vsel %vm245, %v183, %v225
        %vm247 = vcmask 261120
        %v248 = vsel %vm247, %v246, %v228
        %vm249 = vcmask 392192
        %v250 = vsel %vm249, %v248, %v231
        %vm251 = vcmask 523264
        %v252 = vsel %vm251, %v250, %v234
        %vm253 = vcmask 654336
        %v254 = vsel %vm253, %v252, %v237
        %vm255 = vcmask 785408
        %v256 = vsel %vm255, %v254, %v240
        %vm257 = vcmask 916480
        %v258 = vsel %vm257, %v256, %v243
        %vm259 = vcmp.gt.s32.totalorder %v185, 0
        %vm260 = vcmp.gt.s32.totalorder %v185, 1
        %v261 = vsel %vm259, 1, 0
        %262 = vset.pattern.permute.xlu0 0
        %263 = vperm.xlu0 %262, %v261
        %v264 = vpop.permute.xlu0 %263
        %vm265 = vcmp.eq.s32.totalorder %v264, 1
        %v266 = vsel %vm265, %v258, 0.0
        %v267 = vsel %vm221, 1, 0
        %v268 = vsel %vm222, 1, 0
        %vm269 = vcmp.eq.s32.totalorder %v267, 1
        %vm270 = vcmp.eq.s32.totalorder %v268, 1
        %v271 = vsel %vm269, %v266, -100000.0
        %v272 = vsel %vm270, %v266, -100000.0
        %v274 = vlaneseq
        %v275 = vshrl.u32 %v274, 7
        %v276 = vsub.s32 0, %v275
        %v277 = vrot.slane %v184, %v276
        %v278 = vlaneseq
        %v279 = vshrl.u32 %v278, 7
        %v280 = vsub.s32 1, %v279
        %v281 = vrot.slane %v184, %v280
        %v284 = vadd.f32 %v258, %v277
        %v285 = vadd.f32 %v258, %v281
        %v286 = vsel %vm260, 1, 0
        %287 = vset.pattern.permute.xlu0 0
        %288 = vperm.xlu0 %287, %v286
        %v289 = vpop.permute.xlu0 %288
        %vm290 = vcmp.eq.s32.totalorder %v289, 1
        %v291 = vsel %vm290, %v284, %v271
        %v292 = vsel %vm290, %v285, %v272
        %293 = vst [vmem:[%s174] sm:$0xff] %v291
        %294 = vst [vmem:[%s174 + $0x8] sm:$0xff] %v292
        %s295 = sand.u32 %s98, 1
        %s296 = scalar_lea.sflag [#allocation3], %s295
        %s297 = sand.u32 %s98, 1
        %s298 = smul.addr %s297, 16
        %s299 = scalar_lea.vmem [#allocation2], %s298
        // Predicated region
        $region33: #{tpu_custom_call.1} parent=31 // pred_check
          %p300 = pneg %p108
        $region34: #{tpu_custom_call.1} parent=31 // pred_check_branch
          %302 = sbr.rel (%p300) target = $region36
        $region35: #{tpu_custom_call.1} parent=31 // pred_region
          %s304 = ssub.s32 256, 256
          %305 = vsyncadd %s296, %s304
          %s306 = smul.addr %s17, 2
          %s307 = smul.addr %s306, 128
          %s308 = scalar_lea.hbm %s3, %s307
          %s310 = sshll.u32 %s299, 4
          %s311 = int_to_ptr.vmem [resolvable:$true] %s310
          %313 = dma.vmem_to_hbm [thread:$0]  %s311, 256, %s308, %s296
        $region36: #{tpu_custom_call.1} parent=31 // pred_fallthru
          _
      $region32: #{tpu_custom_call.1} parent=5 // pred_fallthru
        _
      %p314 = scmp.le.s32.totalorder 2, %s12
      // Predicated region
      $region37: #{tpu_custom_call.1} parent=5 // pred_check
        %p315 = pneg %p314
      $region38: #{tpu_custom_call.1} parent=5 // pred_check_branch
        %317 = sbr.rel (%p315) target = $region40
      $region39: #{tpu_custom_call.1} parent=5 // pred_region
        %s318 = ssub.s32 %s12, 2
        // Predicated region
        $region41: #{tpu_custom_call.1} parent=39 // pred_check
          %p319 = pneg %p114
        $region42: #{tpu_custom_call.1} parent=39 // pred_check_branch
          %321 = sbr.rel (%p319) target = $region44
        $region43: #{tpu_custom_call.1} parent=39 // pred_region
          %s322 = sand.u32 %s99, 1
          %s323 = scalar_lea.sflag [#allocation3], %s322
          %s324 = sand.u32 %s99, 1
          %s325 = smul.addr %s324, 16
          %s326 = scalar_lea.vmem [#allocation2], %s325
          %327 = dma.done %s323, 256
        $region44: #{tpu_custom_call.1} parent=39 // pred_fallthru
          _
      $region40: #{tpu_custom_call.1} parent=5 // pred_fallthru
        _
    $region6: #{tpu_custom_call.1} parent=1 // loop_footer
      %s16 = sadd.s32 1, %s12
    $region7: #{tpu_custom_call.1} parent=1 // loop_footer_branch
      %11 = sbr.rel target = $region3
    $region8: #{tpu_custom_call.1} parent=1 // loop_exit
      _
    %328 = vsyncpa [#allocation3], 1
    %s329 = scalar_lea.sflag [#allocation3], 1
    %330 = vsyncpa %s329, 1

</llo_original>
